<compile_context>
chip_gen: v7x
topology: tpu7x:2x2x1
jax: 0.10.0
libtpu: 0.0.40
codegen_flags: <defaults>
</compile_context>

<pallas_src>
import jax
import jax.numpy as jnp
from jax.experimental import pallas as pl
from jax.experimental.pallas import tpu as pltpu


def _make_kernel(c_in, c_out, use_mxu):
    def kernel(x_ref, w_ref, b_ref, o_ref):
        # x_ref: (c_in, tile_m)   channels on sublanes, pixels on lanes
        # w_ref: (c_out, c_in)    VMEM-resident across the grid
        # b_ref: (c_out, 1)
        # o_ref: (c_out, tile_m)  lane-dense output (native NCHW layout)
        y = x_ref[...].astype(jnp.float32)
        y = y * jax.nn.sigmoid(y)                       # SiLU: VPU mul + EUP sigmoid
        w = w_ref[...].astype(jnp.float32)
        if use_mxu:
            acc = jnp.dot(w, y, preferred_element_type=jnp.float32)
        else:
            # K,N this small would waste >95% of the MXU; unrolled broadcast
            # FMAs keep this memory-bound op entirely on the VPU.
            tile_m = y.shape[1]
            acc = jnp.zeros((c_out, tile_m), jnp.float32)
            for k in range(c_in):                       # static unroll, tiny c_in
                acc = acc + w[:, k:k + 1] * y[k:k + 1, :]
        o_ref[...] = (acc + b_ref[...].astype(jnp.float32)).astype(o_ref.dtype)
    return kernel


def skip_cell_down(x_nchw, weight, bias, *, max_tile_m=1024):
    """x_nchw: (N, C_in, H, W); weight: (C_out, C_in); bias: (C_out,).

    Returns (N, C_out, ceil(H/2), ceil(W/2)) in NCHW, with no transposes.
    """
    N, C_in, H, W = x_nchw.shape
    C_out = weight.shape[0]
    Ho = (H - 1) // 2 + 1
    Wo = (W - 1) // 2 + 1
    M = Ho * Wo

    # Stride-2 1x1 conv == subsample even pixels.  Do it first, on NCHW.
    # TODO(synk): fold the ::2 subsample into the kernel with a manual strided
    # DMA (memory_space=pl.ANY) to remove this extra HBM pass entirely.
    x_rows = x_nchw[:, :, ::2, ::2].reshape(N, C_in, M)

    # Pixel-axis tile: either the full axis or a multiple of 128 lanes
    # (partial trailing tiles are masked on store, and every output column
    # depends only on its own input column, so padding is harmless).
    tile_m = M if M <= max_tile_m else max_tile_m
    grid_m = pl.cdiv(M, tile_m)

    use_mxu = min(C_in, C_out) >= 32
    kernel = _make_kernel(C_in, C_out, use_mxu)

    # Explicit VMEM budget: double-buffered in/out tiles + resident W/b,
    # with headroom; capped so it is safe on v5e(16MiB scoped)/v6e/v7x(64MiB).
    itemsize = jnp.dtype(x_nchw.dtype).itemsize
    est = 2 * 2 * tile_m * (C_in + C_out) * itemsize + C_out * (C_in + 1) * 4
    vmem_limit = int(min(max(4 * est, 16 * 1024 * 1024), 64 * 1024 * 1024))

    out_rows = pl.pallas_call(
        kernel,
        out_shape=jax.ShapeDtypeStruct((N, C_out, M), x_nchw.dtype),
        grid_spec=pltpu.PrefetchScalarGridSpec(
            num_scalar_prefetch=0,
            grid=(N, grid_m),
            in_specs=[
                pl.BlockSpec((None, C_in, tile_m), lambda n, m: (n, 0, m)),
                pl.BlockSpec((C_out, C_in), lambda n, m: (0, 0)),
                pl.BlockSpec((C_out, 1), lambda n, m: (0, 0)),
            ],
            out_specs=pl.BlockSpec((None, C_out, tile_m),
                                   lambda n, m: (n, 0, m)),
        ),
        compiler_params=pltpu.CompilerParams(
            dimension_semantics=("parallel", "parallel"),
            vmem_limit_bytes=vmem_limit),
    )(x_rows, weight, bias.reshape(C_out, 1))

    # (N, C_out, Ho*Wo) -> (N, C_out, Ho, Wo): pure reshape, already NCHW.
    return out_rows.reshape(N, C_out, Ho, Wo)


def init_params(key, in_channels, out_channels):
    """Synthetic params matching the PyTorch module.

    Each conv_i: weight (out_channels//4, in_channels, 1, 1), bias
    (out_channels//4,).  Stacked along out-channels (concat order
    conv_1..conv_4) into a single (C_out, C_in) matmul weight.
    """
    if out_channels % 4 != 0:
        raise ValueError("out_channels in SkipCellDown must be a multiple of four")
    oc4 = out_channels // 4
    ws, bs = [], []
    for i in range(4):
        kw, kb = jax.random.split(jax.random.fold_in(key, i))
        ws.append(jax.random.normal(kw, (oc4, in_channels, 1, 1), jnp.float32) * 0.1)
        bs.append(jax.random.normal(kb, (oc4,), jnp.float32) * 0.1)
    weight = jnp.concatenate(ws, axis=0)[:, :, 0, 0]      # (C_out, C_in)
    bias = jnp.concatenate(bs, axis=0)                    # (C_out,)
    return weight, bias


def _reference(x_nchw, weight, bias):
    # Pure-JAX reference of the PyTorch forward.
    y = x_nchw * jax.nn.sigmoid(x_nchw)
    y = y[:, :, ::2, ::2]
    return jnp.einsum("nchw,oc->nohw", y, weight) + bias[None, :, None, None]


if __name__ == "__main__":
    key = jax.random.PRNGKey(0)
    N, C_in, H, W = 2, 4, 16, 16
    C_out = 8

    kx, kp = jax.random.split(key)
    x = jax.random.normal(kx, (N, C_in, H, W), jnp.float32)
    weight, bias = init_params(kp, C_in, C_out)

    out = jax.block_until_ready(skip_cell_down(x, weight, bias))

    ref = _reference(x, weight, bias)
    assert out.shape == (N, C_out, H // 2, W // 2), out.shape
    assert jnp.allclose(out, ref, atol=1e-5, rtol=1e-5), (
        float(jnp.max(jnp.abs(out - ref))))

    print("KERNEL_OK")
</pallas_src>

<mosaic_0001>
module attributes {stable_mosaic.version = 11 : i64} {
  func.func @kernel(%arg0: i32, %arg1: i32, %arg2: memref<1x4x64xf32, #tpu.memory_space<vmem>>, %arg3: memref<8x4xf32, #tpu.memory_space<vmem>>, %arg4: memref<8x1xf32, #tpu.memory_space<vmem>>, %arg5: memref<1x8x64xf32, #tpu.memory_space<vmem>>) attributes {dimension_semantics = [#tpu.dimension_semantics<parallel>, #tpu.dimension_semantics<parallel>], iteration_bounds = array<i64: 2, 1>, scalar_prefetch = 0 : i64, scratch_operands = 0 : i64, tpu.core_type = #tpu.core_type<tc>, window_params = [{transform_indices = @transform_0, window_bounds = array<i64: 1, 4, 64>}, {pipeline_mode = #tpu.pipeline_mode<synchronous>, transform_indices = @transform_1, window_bounds = array<i64: 8, 4>}, {pipeline_mode = #tpu.pipeline_mode<synchronous>, transform_indices = @transform_2, window_bounds = array<i64: 8, 1>}, {transform_indices = @transform_3, window_bounds = array<i64: 1, 8, 64>}]} {
    %c0 = arith.constant 0 : index
    %c0_0 = arith.constant 0 : index
    %c0_1 = arith.constant 0 : index
    %0 = vector.load %arg2[%c0, %c0_0, %c0_1] : memref<1x4x64xf32, #tpu.memory_space<vmem>>, vector<1x4x64xf32>
    %1 = vector.shape_cast %0 : vector<1x4x64xf32> to vector<4x64xf32>
    %2 = arith.negf %1 : vector<4x64xf32>
    %3 = math.exp %2 : vector<4x64xf32>
    %cst = arith.constant 1.000000e+00 : f32
    %4 = vector.broadcast %cst : f32 to vector<4x64xf32>
    %5 = arith.addf %4, %3 : vector<4x64xf32>
    %6 = arith.divf %4, %5 : vector<4x64xf32>
    %7 = arith.mulf %1, %6 : vector<4x64xf32>
    %c0_2 = arith.constant 0 : index
    %c0_3 = arith.constant 0 : index
    %8 = vector.load %arg3[%c0_2, %c0_3] : memref<8x4xf32, #tpu.memory_space<vmem>>, vector<8x4xf32>
    %cst_4 = arith.constant 0.000000e+00 : f32
    %9 = vector.broadcast %cst_4 : f32 to vector<8x64xf32>
    %10 = vector.extract_strided_slice %8 {offsets = [0, 0], sizes = [8, 1], strides = [1, 1]} : vector<8x4xf32> to vector<8x1xf32>
    %11 = vector.extract_strided_slice %7 {offsets = [0, 0], sizes = [1, 64], strides = [1, 1]} : vector<4x64xf32> to vector<1x64xf32>
    %12 = vector.broadcast %10 : vector<8x1xf32> to vector<8x64xf32>
    %13 = vector.broadcast %11 : vector<1x64xf32> to vector<8x64xf32>
    %14 = arith.mulf %12, %13 : vector<8x64xf32>
    %15 = arith.addf %9, %14 : vector<8x64xf32>
    %16 = vector.extract_strided_slice %8 {offsets = [0, 1], sizes = [8, 1], strides = [1, 1]} : vector<8x4xf32> to vector<8x1xf32>
    %17 = vector.extract_strided_slice %7 {offsets = [1, 0], sizes = [1, 64], strides = [1, 1]} : vector<4x64xf32> to vector<1x64xf32>
    %18 = vector.broadcast %16 : vector<8x1xf32> to vector<8x64xf32>
    %19 = vector.broadcast %17 : vector<1x64xf32> to vector<8x64xf32>
    %20 = arith.mulf %18, %19 : vector<8x64xf32>
    %21 = arith.addf %15, %20 : vector<8x64xf32>
    %22 = vector.extract_strided_slice %8 {offsets = [0, 2], sizes = [8, 1], strides = [1, 1]} : vector<8x4xf32> to vector<8x1xf32>
    %23 = vector.extract_strided_slice %7 {offsets = [2, 0], sizes = [1, 64], strides = [1, 1]} : vector<4x64xf32> to vector<1x64xf32>
    %24 = vector.broadcast %22 : vector<8x1xf32> to vector<8x64xf32>
    %25 = vector.broadcast %23 : vector<1x64xf32> to vector<8x64xf32>
    %26 = arith.mulf %24, %25 : vector<8x64xf32>
    %27 = arith.addf %21, %26 : vector<8x64xf32>
    %28 = vector.extract_strided_slice %8 {offsets = [0, 3], sizes = [8, 1], strides = [1, 1]} : vector<8x4xf32> to vector<8x1xf32>
    %29 = vector.extract_strided_slice %7 {offsets = [3, 0], sizes = [1, 64], strides = [1, 1]} : vector<4x64xf32> to vector<1x64xf32>
    %30 = vector.broadcast %28 : vector<8x1xf32> to vector<8x64xf32>
    %31 = vector.broadcast %29 : vector<1x64xf32> to vector<8x64xf32>
    %32 = arith.mulf %30, %31 : vector<8x64xf32>
    %33 = arith.addf %27, %32 : vector<8x64xf32>
    %c0_5 = arith.constant 0 : index
    %c0_6 = arith.constant 0 : index
    %34 = vector.load %arg4[%c0_5, %c0_6] : memref<8x1xf32, #tpu.memory_space<vmem>>, vector<8x1xf32>
    %35 = vector.broadcast %34 : vector<8x1xf32> to vector<8x64xf32>
    %36 = arith.addf %33, %35 : vector<8x64xf32>
    %c0_7 = arith.constant 0 : index
    %c0_8 = arith.constant 0 : index
    %c0_9 = arith.constant 0 : index
    %37 = vector.load %arg5[%c0_7, %c0_8, %c0_9] : memref<1x8x64xf32, #tpu.memory_space<vmem>>, vector<1x8x64xf32>
    %38 = vector.shape_cast %37 : vector<1x8x64xf32> to vector<8x64xf32>
    %39 = vector.shape_cast %36 : vector<8x64xf32> to vector<1x8x64xf32>
    tpu.vector_store %arg5[%c0_7, %c0_8, %c0_9], %39 {strides = array<i32>} : memref<1x8x64xf32, #tpu.memory_space<vmem>>, vector<1x8x64xf32>,
    return
  }
  func.func @transform_0(%arg0: i32, %arg1: i32) -> (i32, i32, i32) {
    %c0_i32 = arith.constant 0 : i32
    %c0_i32_0 = arith.constant 0 : i32
    return %arg0, %c0_i32, %arg1 : i32, i32, i32
  }
  func.func @transform_1(%arg0: i32, %arg1: i32) -> (i32, i32) {
    %c0_i32 = arith.constant 0 : i32
    %c0_i32_0 = arith.constant 0 : i32
    %c0_i32_1 = arith.constant 0 : i32
    return %c0_i32, %c0_i32_0 : i32, i32
  }
  func.func @transform_2(%arg0: i32, %arg1: i32) -> (i32, i32) {
    %c0_i32 = arith.constant 0 : i32
    %c0_i32_0 = arith.constant 0 : i32
    %c0_i32_1 = arith.constant 0 : i32
    return %c0_i32, %c0_i32_0 : i32, i32
  }
  func.func @transform_3(%arg0: i32, %arg1: i32) -> (i32, i32, i32) {
    %c0_i32 = arith.constant 0 : i32
    %c0_i32_0 = arith.constant 0 : i32
    return %arg0, %c0_i32, %arg1 : i32, i32, i32
  }
}

</mosaic_0001>

<llo_original>
// kernel: tpu_custom_call.1
$region0: #{tpu_custom_call.1}
  #allocation0 [shape = 'u32[]', space=smem, size = 0x4, offset = 0x4, fixed_abs, tag = 'smem constant byte address 0x4 - core index']
  #allocation1 [shape = 'u32[144,128]{1,0:T(1,128)}', space=vmem, size = 0x12000, scoped, tag = 'internal scratch']
  %s0 = inlined_call_operand.vmem [shape: f32[2,4,64], index: 0, kind: input, shape index: {}]
  %s1 = inlined_call_operand.vmem [shape: f32[8,4], index: 1, kind: input, shape index: {}]
  %s2 = inlined_call_operand.vmem [shape: f32[8,1], index: 2, kind: input, shape index: {}]
  %s3 = inlined_call_operand.hbm [shape: f32[2,8,64], index: 3, kind: output, shape index: {}]
  %s4 = sld [smem:[#allocation0]]
  $region45: #{tpu_custom_call.1} parent=0
    _
  %s6 = ssub.s32 1, %s4
  %s7 = scalar_select 0, %s6, %s4
  $region1: #{tpu_custom_call.1} parent=0
    #allocation2 [shape = 'u8[8192]{0}', space=vmem, size = 0x2000, scoped, tag = 'output window, operand 0']
    #allocation3 [shape = 's32[2]{0}', space=sflag, size = 0x8, scoped, tag = 'scoped memory for tpu_custom_call.1']
    %8 = vsyncpa [#allocation3], 0
    %s9 = scalar_lea.sflag [#allocation3], 1
    %10 = vsyncpa %s9, 0
    loop: start=0, step=1, limit=4
    $region2: #{tpu_custom_call.1} parent=1 // loop_pre_header
      _
    $region3: #{tpu_custom_call.1} parent=1 // loop_header
      %s12 = sphi 0, %s16
      %p13 = scmp.ge.s32.totalorder %s12, 4
      %s19 = sphi 0, %s31
      %s20 = sphi 0, %s27
      %s21 = sphi 0, %s19
      %s22 = sphi 0, %s20
      %s23 = sphi 0, %s21
      %s24 = sphi 0, %s22
      %s36 = sphi 0, %s38
      %s39 = sphi 0, %s36
      %s40 = sphi 0, %s39
      %s56 = sphi 0, %s40
      %s60 = sphi 0, %s60
      %s62 = sphi 0, %s60
      %s63 = sphi 0, %s62
      %s77 = sphi 0, %s63
      %s81 = sphi 0, %s81
      %s83 = sphi 0, %s81
      %s84 = sphi 0, %s83
      %s98 = sphi 0, %s84
      %s106 = sphi 0, %s108
      %s109 = sphi 0, %s106
      %s110 = sphi 0, %s109
      %s126 = sphi 0, %s110
    $region4: #{tpu_custom_call.1} parent=1 // loop_header_branch
      %15 = sbr.rel (%p13) target = $region8
    $region5: #{tpu_custom_call.1} parent=1 // loop_body
      %s17 = ssub.s32 %s12, 1
      %s18 = ssub.s32 %s12, 2
      %s25 = sadd.s32 1, %s20
      %p26 = scmp.ge.s32.totalorder %s25, 1
      %s27 = scalar_select %p26, 0, %s25
      %s28 = sadd.s32 1, %s19
      %s29 = scalar_select %p26, %s28, %s19
      %p30 = scmp.ge.s32.totalorder %s29, 2
      %s31 = scalar_select %p30, 0, %s29
      %s32 = ssub.s32 %s19, %s31
      %s33 = ssub.s32 %s20, %s27
      %s34 = sor.u32 %s32, %s33
      %p35 = scmp.eq.s32.totalorder %s34, 0
      %s37 = sadd.s32 %s36, 1
      %s38 = scalar_select %p35, %s36, %s37
      %p41 = pneg %p35
      %p42 = scmp.eq.s32.totalorder %s12, 1
      %p43 = por %p41, %p42
      %p44 = scmp.ne.s32.totalorder %s36, %s39
      %p45 = scmp.eq.s32.totalorder %s12, 0
      %p46 = por %p44, %p45
      %p47 = scmp.ne.s32.totalorder %s36, %s39
      %p48 = scmp.eq.s32.totalorder %s17, 1
      %p49 = por %p47, %p48
      %p50 = scmp.ne.s32.totalorder %s39, %s40
      %p51 = scmp.eq.s32.totalorder %s17, 0
      %p52 = por %p50, %p51
      %p53 = scmp.ne.s32.totalorder %s39, %s40
      %p54 = scmp.eq.s32.totalorder %s18, 1
      %p55 = por %p53, %p54
      %p57 = scmp.ne.s32.totalorder %s40, %s56
      %p58 = scmp.eq.s32.totalorder %s18, 0
      %p59 = por %p57, %p58
      %s61 = sadd.s32 %s60, 1
      %p64 = scmp.eq.s32.totalorder %s12, 1
      %p65 = scmp.ne.s32.totalorder %s60, %s62
      %p66 = scmp.eq.s32.totalorder %s12, 0
      %p67 = por %p65, %p66
      %p68 = scmp.ne.s32.totalorder %s60, %s62
      %p69 = scmp.eq.s32.totalorder %s17, 1
      %p70 = por %p68, %p69
      %p71 = scmp.ne.s32.totalorder %s62, %s63
      %p72 = scmp.eq.s32.totalorder %s17, 0
      %p73 = por %p71, %p72
      %p74 = scmp.ne.s32.totalorder %s62, %s63
      %p75 = scmp.eq.s32.totalorder %s18, 1
      %p76 = por %p74, %p75
      %p78 = scmp.ne.s32.totalorder %s63, %s77
      %p79 = scmp.eq.s32.totalorder %s18, 0
      %p80 = por %p78, %p79
      %s82 = sadd.s32 %s81, 1
      %p85 = scmp.eq.s32.totalorder %s12, 1
      %p86 = scmp.ne.s32.totalorder %s81, %s83
      %p87 = scmp.eq.s32.totalorder %s12, 0
      %p88 = por %p86, %p87
      %p89 = scmp.ne.s32.totalorder %s81, %s83
      %p90 = scmp.eq.s32.totalorder %s17, 1
      %p91 = por %p89, %p90
      %p92 = scmp.ne.s32.totalorder %s83, %s84
      %p93 = scmp.eq.s32.totalorder %s17, 0
      %p94 = por %p92, %p93
      %p95 = scmp.ne.s32.totalorder %s83, %s84
      %p96 = scmp.eq.s32.totalorder %s18, 1
      %p97 = por %p95, %p96
      %p99 = scmp.ne.s32.totalorder %s84, %s98
      %p100 = scmp.eq.s32.totalorder %s18, 0
      %p101 = por %p99, %p100
      %s102 = ssub.s32 %s19, %s31
      %s103 = ssub.s32 %s20, %s27
      %s104 = sor.u32 %s102, %s103
      %p105 = scmp.eq.s32.totalorder %s104, 0
      %s107 = sadd.s32 %s106, 1
      %s108 = scalar_select %p105, %s106, %s107
      %p111 = pneg %p105
      %p112 = scmp.eq.s32.totalorder %s12, 1
      %p113 = por %p111, %p112
      %p114 = scmp.ne.s32.totalorder %s106, %s109
      %p115 = scmp.eq.s32.totalorder %s12, 0
      %p116 = por %p114, %p115
      %p117 = scmp.ne.s32.totalorder %s106, %s109
      %p118 = scmp.eq.s32.totalorder %s17, 1
      %p119 = por %p117, %p118
      %p120 = scmp.ne.s32.totalorder %s109, %s110
      %p121 = scmp.eq.s32.totalorder %s17, 0
      %p122 = por %p120, %p121
      %p123 = scmp.ne.s32.totalorder %s109, %s110
      %p124 = scmp.eq.s32.totalorder %s18, 1
      %p125 = por %p123, %p124
      %p127 = scmp.ne.s32.totalorder %s110, %s126
      %p128 = scmp.eq.s32.totalorder %s18, 0
      %p129 = por %p127, %p128
      %p130 = scmp.le.s32.totalorder 1, %s12
      %p131 = scmp.lt.s32.totalorder %s12, 3
      %p132 = pnand %p130, %p131
      %p133 = pneg %p132
      // Predicated region
      $region9: #{tpu_custom_call.1} parent=5 // pred_check
        _
      $region10: #{tpu_custom_call.1} parent=5 // pred_check_branch
        %135 = sbr.rel (%p132) target = $region12
      $region11: #{tpu_custom_call.1} parent=5 // pred_region
        %s136 = ssub.s32 %s12, 1
        // Predicated region
        $region13: #{tpu_custom_call.1} parent=11 // pred_check
          %p137 = pneg %p73
        $region14: #{tpu_custom_call.1} parent=11 // pred_check_branch
          %139 = sbr.rel (%p137) target = $region16
        $region15: #{tpu_custom_call.1} parent=11 // pred_region
          _
        $region16: #{tpu_custom_call.1} parent=11 // pred_fallthru
          _
        // Predicated region
        $region17: #{tpu_custom_call.1} parent=11 // pred_check
          %p140 = pneg %p94
        $region18: #{tpu_custom_call.1} parent=11 // pred_check_branch
          %142 = sbr.rel (%p140) target = $region20
        $region19: #{tpu_custom_call.1} parent=11 // pred_region
          _
        $region20: #{tpu_custom_call.1} parent=11 // pred_fallthru
          _
      $region12: #{tpu_custom_call.1} parent=5 // pred_fallthru
        _
      %p143 = scmp.lt.s32.totalorder %s12, 2
      // Predicated region
      $region21: #{tpu_custom_call.1} parent=5 // pred_check
        %p144 = pneg %p143
      $region22: #{tpu_custom_call.1} parent=5 // pred_check_branch
        %146 = sbr.rel (%p144) target = $region24
      $region23: #{tpu_custom_call.1} parent=5 // pred_region
        // Predicated region
        $region25: #{tpu_custom_call.1} parent=23 // pred_check
          %p147 = pneg %p46
        $region26: #{tpu_custom_call.1} parent=23 // pred_check_branch
          %149 = sbr.rel (%p147) target = $region28
        $region27: #{tpu_custom_call.1} parent=23 // pred_region
          %p150 = scmp.lt.s32.totalorder %s19, 1
          %s151 = scalar_select %p150, %s19, 1
          %p152 = scmp.lt.s32.totalorder %s20, 0
          %s153 = scalar_select %p152, %s20, 0
          %s154 = sadd.s32 %s153, %s151
          %s155 = smul.addr %s154, 4
          %s156 = scalar_lea.vmem %s0, %s155
        $region28: #{tpu_custom_call.1} parent=23 // pred_fallthru
          _
      $region24: #{tpu_custom_call.1} parent=5 // pred_fallthru
        _
      %p157 = scmp.le.s32.totalorder 1, %s12
      %p158 = scmp.lt.s32.totalorder %s12, 3
      %p159 = pnand %p157, %p158
      %p160 = pneg %p159
      // Predicated region
      $region29: #{tpu_custom_call.1} parent=5 // pred_check
        _
      $region30: #{tpu_custom_call.1} parent=5 // pred_check_branch
        %162 = sbr.rel (%p159) target = $region32
      $region31: #{tpu_custom_call.1} parent=5 // pred_region
        %s163 = ssub.s32 %s12, 1
        %p164 = scmp.lt.s32.totalorder %s21, 1
        %s165 = scalar_select %p164, %s21, 1
        %p166 = scmp.lt.s32.totalorder %s22, 0
        %s167 = scalar_select %p166, %s22, 0
        %s168 = sadd.s32 %s167, %s165
        %s169 = smul.addr %s168, 4
        %s170 = scalar_lea.vmem %s0, %s169
        %p171 = pneg %p52
        %p172 = pneg %p49
        %p173 = pneg %p73
        %p174 = pneg %p70
        %p175 = pneg %p94
        %p176 = pneg %p91
        %p177 = pneg %p122
        %p178 = pneg %p119
        %s179 = sand.u32 %s109, 1
        %s180 = scalar_lea.sflag [#allocation3], %s179
        %s181 = sand.u32 %s109, 1
        %s182 = smul.addr %s181, 8
        %s183 = scalar_lea.vmem [#allocation2], %s182
        %p184 = scmp.lt.s32.totalorder %s21, 1
        %s185 = scalar_select %p184, %s21, 1
        %p186 = scmp.lt.s32.totalorder %s22, 0
        %s187 = scalar_select %p186, %s22, 0
        %s188 = sadd.s32 %s187, %s185
        %s189 = smul.addr %s188, 4
        %s190 = scalar_lea.vmem %s0, %s189
        %v191 = vld [vmem:[%s190] sm:$0xf]
        %v192 = vxor.u32 %v191, 2147483648
        %v193 = vmul.f32 %v192, 1.442695
        %v194 = vpow.pop %v193
        %v195 = vadd.f32 %v194, 1.0
        %v196 = vrcp.pop %v195
        %v197 = vmul.f32 1.0, %v196
        %v198 = vmul.f32 %v191, %v197
        %v199 = vld [vmem:[%s1] sm:$0xff]
        %201 = vset.pattern.permute.xlu0 0
        %202 = vperm.xlu0 %201, %v199
        %v203 = vpop.permute.xlu0 %202
        %v205 = vlaneseq
        %v206 = vshrl.u32 %v205, 7
        %v207 = vsub.s32 0, %v206
        %v208 = vrot.slane %v198, %v207
        %v209 = vmul.f32 %v203, %v208
        %v210 = vadd.f32 %v209, 0.0
        %211 = vset.pattern.permute.xlu0 1
        %212 = vperm.xlu0 %211, %v199
        %v213 = vpop.permute.xlu0 %212
        %v215 = vlaneseq
        %v216 = vshrl.u32 %v215, 7
        %v217 = vsub.s32 1, %v216
        %v218 = vrot.slane %v198, %v217
        %v219 = vmul.f32 %v213, %v218
        %v220 = vadd.f32 %v210, %v219
        %221 = vset.pattern.permute.xlu0 2
        %222 = vperm.xlu0 %221, %v199
        %v223 = vpop.permute.xlu0 %222
        %v225 = vlaneseq
        %v226 = vshrl.u32 %v225, 7
        %v227 = vsub.s32 2, %v226
        %v228 = vrot.slane %v198, %v227
        %v229 = vmul.f32 %v223, %v228
        %v230 = vadd.f32 %v220, %v229
        %231 = vset.pattern.permute.xlu0 3
        %232 = vperm.xlu0 %231, %v199
        %v233 = vpop.permute.xlu0 %232
        %v235 = vlaneseq
        %v236 = vshrl.u32 %v235, 7
        %v237 = vsub.s32 3, %v236
        %v238 = vrot.slane %v198, %v237
        %v239 = vmul.f32 %v233, %v238
        %v240 = vadd.f32 %v230, %v239
        %v241 = vld [vmem:[%s2] sm:$0xff]
        %243 = vset.pattern.permute.xlu0 0
        %244 = vperm.xlu0 %243, %v241
        %v245 = vpop.permute.xlu0 %244
        %v247 = vadd.f32 %v240, %v245
        %vm248 = vcmask 523264
        %249 = vst.msk [vmem:[%s183] sm:$0xff] %vm248, %v247
        %s250 = sand.u32 %s109, 1
        %s251 = scalar_lea.sflag [#allocation3], %s250
        %s252 = sand.u32 %s109, 1
        %s253 = smul.addr %s252, 8
        %s254 = scalar_lea.vmem [#allocation2], %s253
        // Predicated region
        $region33: #{tpu_custom_call.1} parent=31 // pred_check
          %p255 = pneg %p119
        $region34: #{tpu_custom_call.1} parent=31 // pred_check_branch
          %257 = sbr.rel (%p255) target = $region36
        $region35: #{tpu_custom_call.1} parent=31 // pred_region
          %s259 = ssub.s32 128, 128
          %260 = vsyncadd %s251, %s259
          %s261 = sadd.s32 %s22, %s21
          %s262 = smul.addr %s261, 128
          %s263 = scalar_lea.hbm %s3, %s262
          %s265 = sshll.u32 %s254, 4
          %s266 = int_to_ptr.vmem [resolvable:$true] %s265
          %268 = dma.vmem_to_hbm [thread:$0]  %s266, 128, %s263, %s251
        $region36: #{tpu_custom_call.1} parent=31 // pred_fallthru
          _
      $region32: #{tpu_custom_call.1} parent=5 // pred_fallthru
        _
      %p269 = scmp.le.s32.totalorder 2, %s12
      // Predicated region
      $region37: #{tpu_custom_call.1} parent=5 // pred_check
        %p270 = pneg %p269
      $region38: #{tpu_custom_call.1} parent=5 // pred_check_branch
        %272 = sbr.rel (%p270) target = $region40
      $region39: #{tpu_custom_call.1} parent=5 // pred_region
        %s273 = ssub.s32 %s12, 2
        // Predicated region
        $region41: #{tpu_custom_call.1} parent=39 // pred_check
          %p274 = pneg %p125
        $region42: #{tpu_custom_call.1} parent=39 // pred_check_branch
          %276 = sbr.rel (%p274) target = $region44
        $region43: #{tpu_custom_call.1} parent=39 // pred_region
          %s277 = sand.u32 %s110, 1
          %s278 = scalar_lea.sflag [#allocation3], %s277
          %s279 = sand.u32 %s110, 1
          %s280 = smul.addr %s279, 8
          %s281 = scalar_lea.vmem [#allocation2], %s280
          %282 = dma.done %s278, 128
        $region44: #{tpu_custom_call.1} parent=39 // pred_fallthru
          _
      $region40: #{tpu_custom_call.1} parent=5 // pred_fallthru
        _
    $region6: #{tpu_custom_call.1} parent=1 // loop_footer
      %s16 = sadd.s32 1, %s12
    $region7: #{tpu_custom_call.1} parent=1 // loop_footer_branch
      %11 = sbr.rel target = $region3
    $region8: #{tpu_custom_call.1} parent=1 // loop_exit
      _
    %283 = vsyncpa [#allocation3], 1
    %s284 = scalar_lea.sflag [#allocation3], 1
    %285 = vsyncpa %s284, 1

</llo_original>
